<compile_context>
chip_gen: v6e
topology: v6e:2x2x1
jax: 0.10.0
libtpu: 0.0.40
codegen_flags: <defaults>
</compile_context>

<pallas_src>
import jax
import jax.numpy as jnp
from jax import lax
from jax.experimental import pallas as pl
from jax.experimental.pallas import tpu as pltpu


def _round_up(n: int, m: int) -> int:
    return ((n + m - 1) // m) * m


def _mlp_kernel_out1(x_ref, w1_ref, b1_ref, w2_ref, b2_ref, o_ref):
    """output_size == 1 path: MXU fc1 + VPU/XLU epilogue, lane-dense store."""
    x = x_ref[...]                                       # (TB, in)

    # fc1 in batch-on-lanes orientation: (hidden, in) x (TB, in)^T -> (hidden, TB).
    h = lax.dot_general(
        w1_ref[...], x,
        dimension_numbers=(((1,), (1,)), ((), ())),
        preferred_element_type=jnp.float32,
    )
    h = jnp.maximum(h + b1_ref[...], 0.0)                # bias (hidden,1) bcast over lanes

    # fc2 (N=1): VPU multiply + sublane reduce on the XLU -> (1, TB). Avoids a
    # wasted MXU pass + result-FIFO drain for ~0 useful FLOPs.
    y = jnp.sum(h * w2_ref[...], axis=0, keepdims=True) + b2_ref[...]
    o_ref[...] = y[None].astype(o_ref.dtype)             # (1, 1, TB) lane-dense store


def _mlp_kernel_general(x_ref, w1_ref, b1_ref, w2_ref, b2_ref, o_ref):
    """output_size > 1 path: both layers on the MXU, still lane-dense output."""
    x = x_ref[...]                                       # (TB, in)
    h = lax.dot_general(
        w1_ref[...], x,
        dimension_numbers=(((1,), (1,)), ((), ())),
        preferred_element_type=jnp.float32,
    )                                                    # (hidden, TB)
    h = jnp.maximum(h + b1_ref[...], 0.0)
    y = lax.dot_general(
        w2_ref[...], h,
        dimension_numbers=(((1,), (0,)), ((), ())),
        preferred_element_type=jnp.float32,
    ) + b2_ref[...]                                      # (out, TB)
    o_ref[...] = y[None].astype(o_ref.dtype)             # (1, out, TB)


def option_price_predictor(x, w1, b1, w2, b2, tb=None):
    """Fused forward pass of OptionPricePredictor.

    Args:
      x:  (B, input_size) float32
      w1: (hidden, input_size)   -- PyTorch nn.Linear layout (not transposed)
      b1: (hidden,)
      w2: (output, hidden)
      b2: (output,)
      tb: optional batch tile size (lane width of the compute tile).
    Returns:
      (B, output) float32
    """
    B, in_features = x.shape
    hidden = w1.shape[0]
    out = w2.shape[0]

    # Tile heuristic: single grid step for small/medium B (kills per-step
    # overhead); 4096-row tiles beyond that (amortizes the fixed cost while
    # staying well inside even v5e's 16 MiB scoped-VMEM default after the
    # lane-dense restructure: ~0.4 KiB/row).
    if tb is None:
        tb = _round_up(B, 8) if B <= 4096 else 4096
    tb = max(8, min(_round_up(tb, 8), _round_up(B, 8)))

    num_tiles = pl.cdiv(B, tb)
    grid = (num_tiles,)

    # Metadata-only reshapes; no weight transposes in the hot path.
    b1_col = b1.reshape(hidden, 1)
    if out == 1:
        kernel = _mlp_kernel_out1
        w2_arg = w2.reshape(hidden, 1)    # (1, hidden) -> (hidden, 1), same element order
        b2_arg = b2.reshape(1, 1)
    else:
        kernel = _mlp_kernel_general
        w2_arg = w2                       # (out, hidden)
        b2_arg = b2.reshape(out, 1)

    def resident(shape):
        # Same block every grid step -> DMA'd once, stays VMEM-resident.
        return pl.BlockSpec(shape, lambda i: (0,) * len(shape))

    itemsize = jnp.dtype(x.dtype).itemsize
    cost = pl.CostEstimate(
        flops=2 * B * (in_features * hidden + hidden * out),
        transcendentals=0,
        bytes_accessed=itemsize * (x.size + w1.size + b1.size + w2.size
                                   + b2.size + B * out),
    )

    y = pl.pallas_call(
        kernel,
        out_shape=jax.ShapeDtypeStruct((num_tiles, out, tb), x.dtype),
        grid=grid,
        in_specs=[
            pl.BlockSpec((tb, in_features), lambda i: (i, 0)),   # x: tiled over batch
            resident(w1.shape),                                  # (hidden, in)
            resident(b1_col.shape),                              # (hidden, 1)
            resident(w2_arg.shape),                              # (hidden,1) or (out,hidden)
            resident(b2_arg.shape),                              # (1,1) or (out,1)
        ],
        out_specs=pl.BlockSpec((1, out, tb), lambda i: (i, 0, 0)),
        compiler_params=pltpu.CompilerParams(
            dimension_semantics=("parallel",),   # batch steps independent (v7x megacore)
        ),
        cost_estimate=cost,
    )(x, w1, b1_col, w2_arg, b2_arg)

    # (num_tiles, out, tb) -> (B, out); rows past B (batch padding) dropped.
    y = jnp.transpose(y, (0, 2, 1)).reshape(num_tiles * tb, out)[:B]
    return y


def _init_linear(key, out_features, in_features, dtype=jnp.float32):
    """Deterministic init mirroring PyTorch nn.Linear default U(-1/sqrt(in), 1/sqrt(in))."""
    kw, kb = jax.random.split(key)
    bound = 1.0 / jnp.sqrt(jnp.array(in_features, dtype))
    w = jax.random.uniform(kw, (out_features, in_features), dtype,
                           minval=-bound, maxval=bound)
    b = jax.random.uniform(kb, (out_features,), dtype,
                           minval=-bound, maxval=bound)
    return w, b


if __name__ == "__main__":
    # Small shapes consistent with the module: option-pricing features -> price.
    batch = 256
    input_size = 8
    hidden_size = 64
    output_size = 1

    key = jax.random.PRNGKey(0)
    kx, k1, k2 = jax.random.split(key, 3)

    x = jax.random.normal(kx, (batch, input_size), jnp.float32)
    w1, b1 = _init_linear(k1, hidden_size, input_size)
    w2, b2 = _init_linear(k2, output_size, hidden_size)

    # Default tb -> single grid step (grid=(1,)), per perf review.
    y = option_price_predictor(x, w1, b1, w2, b2)
    y = jax.block_until_ready(y)

    # Pure-JAX reference (same semantics as the PyTorch forward).
    ref = jnp.maximum(x @ w1.T + b1, 0.0) @ w2.T + b2
    assert y.shape == (batch, output_size)
    assert jnp.allclose(y, ref, atol=1e-5, rtol=1e-5), float(jnp.max(jnp.abs(y - ref)))

    print("KERNEL_OK")
</pallas_src>

<mosaic_0001>
module attributes {stable_mosaic.version = 11 : i64} {
  func.func @_mlp_kernel_out1(%arg0: i32, %arg1: memref<256x8xf32, #tpu.memory_space<vmem>>, %arg2: memref<64x8xf32, #tpu.memory_space<vmem>>, %arg3: memref<64x1xf32, #tpu.memory_space<vmem>>, %arg4: memref<64x1xf32, #tpu.memory_space<vmem>>, %arg5: memref<1x1xf32, #tpu.memory_space<vmem>>, %arg6: memref<1x1x256xf32, #tpu.memory_space<vmem>>) attributes {dimension_semantics = [#tpu.dimension_semantics<parallel>], iteration_bounds = array<i64: 1>, scalar_prefetch = 0 : i64, scratch_operands = 0 : i64, tpu.core_type = #tpu.core_type<tc>, window_params = [{transform_indices = @transform_0, window_bounds = array<i64: 256, 8>}, {pipeline_mode = #tpu.pipeline_mode<synchronous>, transform_indices = @transform_1, window_bounds = array<i64: 64, 8>}, {pipeline_mode = #tpu.pipeline_mode<synchronous>, transform_indices = @transform_2, window_bounds = array<i64: 64, 1>}, {pipeline_mode = #tpu.pipeline_mode<synchronous>, transform_indices = @transform_3, window_bounds = array<i64: 64, 1>}, {pipeline_mode = #tpu.pipeline_mode<synchronous>, transform_indices = @transform_4, window_bounds = array<i64: 1, 1>}, {transform_indices = @transform_5, window_bounds = array<i64: 1, 1, 256>}]} {
    %c0 = arith.constant 0 : index
    %c0_0 = arith.constant 0 : index
    %0 = vector.load %arg1[%c0, %c0_0] : memref<256x8xf32, #tpu.memory_space<vmem>>, vector<256x8xf32>
    %c0_1 = arith.constant 0 : index
    %c0_2 = arith.constant 0 : index
    %1 = vector.load %arg2[%c0_1, %c0_2] : memref<64x8xf32, #tpu.memory_space<vmem>>, vector<64x8xf32>
    %cst = arith.constant dense<0.000000e+00> : vector<64x256xf32>
    %2 = tpu.matmul %1, %0, %cst {dimension_numbers = #tpu.dot_dimension_numbers<[1], [1], [0], [0], [0, 0, 1, 0], [], []>} : vector<64x8xf32>, vector<256x8xf32>, vector<64x256xf32> -> vector<64x256xf32>
    %c0_3 = arith.constant 0 : index
    %c0_4 = arith.constant 0 : index
    %3 = vector.load %arg3[%c0_3, %c0_4] : memref<64x1xf32, #tpu.memory_space<vmem>>, vector<64x1xf32>
    %4 = vector.broadcast %3 : vector<64x1xf32> to vector<64x256xf32>
    %5 = arith.addf %2, %4 : vector<64x256xf32>
    %cst_5 = arith.constant 0.000000e+00 : f32
    %6 = vector.broadcast %cst_5 : f32 to vector<64x256xf32>
    %7 = arith.maximumf %5, %6 : vector<64x256xf32>
    %c0_6 = arith.constant 0 : index
    %c0_7 = arith.constant 0 : index
    %8 = vector.load %arg4[%c0_6, %c0_7] : memref<64x1xf32, #tpu.memory_space<vmem>>, vector<64x1xf32>
    %9 = vector.broadcast %8 : vector<64x1xf32> to vector<64x256xf32>
    %10 = arith.mulf %7, %9 : vector<64x256xf32>
    %cst_8 = arith.constant dense<0.000000e+00> : vector<256xf32>
    %11 = vector.multi_reduction <add>, %10, %cst_8 [0] : vector<64x256xf32> to vector<256xf32>
    %12 = vector.shape_cast %11 : vector<256xf32> to vector<1x256xf32>
    %c0_9 = arith.constant 0 : index
    %c0_10 = arith.constant 0 : index
    %13 = vector.load %arg5[%c0_9, %c0_10] : memref<1x1xf32, #tpu.memory_space<vmem>>, vector<1x1xf32>
    %14 = vector.broadcast %13 : vector<1x1xf32> to vector<1x256xf32>
    %15 = arith.addf %12, %14 : vector<1x256xf32>
    %16 = vector.shape_cast %15 : vector<1x256xf32> to vector<1x1x256xf32>
    %c0_11 = arith.constant 0 : index
    %c0_12 = arith.constant 0 : index
    %c0_13 = arith.constant 0 : index
    %17 = vector.load %arg6[%c0_11, %c0_12, %c0_13] : memref<1x1x256xf32, #tpu.memory_space<vmem>>, vector<1x1x256xf32>
    tpu.vector_store %arg6[%c0_11, %c0_12, %c0_13], %16 {strides = array<i32>} : memref<1x1x256xf32, #tpu.memory_space<vmem>>, vector<1x1x256xf32>,
    return
  }
  func.func @transform_0(%arg0: i32) -> (i32, i32) {
    %c0_i32 = arith.constant 0 : i32
    %c0_i32_0 = arith.constant 0 : i32
    return %arg0, %c0_i32 : i32, i32
  }
  func.func @transform_1(%arg0: i32) -> (i32, i32) {
    %c0_i32 = arith.constant 0 : i32
    %c0_i32_0 = arith.constant 0 : i32
    %c0_i32_1 = arith.constant 0 : i32
    return %c0_i32, %c0_i32_0 : i32, i32
  }
  func.func @transform_2(%arg0: i32) -> (i32, i32) {
    %c0_i32 = arith.constant 0 : i32
    %c0_i32_0 = arith.constant 0 : i32
    %c0_i32_1 = arith.constant 0 : i32
    return %c0_i32, %c0_i32_0 : i32, i32
  }
  func.func @transform_3(%arg0: i32) -> (i32, i32) {
    %c0_i32 = arith.constant 0 : i32
    %c0_i32_0 = arith.constant 0 : i32
    %c0_i32_1 = arith.constant 0 : i32
    return %c0_i32, %c0_i32_0 : i32, i32
  }
  func.func @transform_4(%arg0: i32) -> (i32, i32) {
    %c0_i32 = arith.constant 0 : i32
    %c0_i32_0 = arith.constant 0 : i32
    %c0_i32_1 = arith.constant 0 : i32
    return %c0_i32, %c0_i32_0 : i32, i32
  }
  func.func @transform_5(%arg0: i32) -> (i32, i32, i32) {
    %c0_i32 = arith.constant 0 : i32
    %c0_i32_0 = arith.constant 0 : i32
    %c0_i32_1 = arith.constant 0 : i32
    return %arg0, %c0_i32, %c0_i32_0 : i32, i32, i32
  }
}

</mosaic_0001>

<llo_original>
// kernel: tpu_custom_call.1
$region0: #{tpu_custom_call.1}
  #allocation0 [shape = 'u32[]', space=smem, size = 0x4, offset = 0x4, fixed_abs, tag = 'smem constant byte address 0x4 - core index']
  #allocation1 [shape = 'u32[144,128]{1,0:T(1,128)}', space=vmem, size = 0x12000, scoped, tag = 'internal scratch']
  #allocation2 [shape = 'f32[1,1]{1,0:T(1,128)S(1)}', space=vmem, size = 0x200, scoped, tag = 'scoped memory for tpu_custom_call.1']
  %s0 = inlined_call_operand.vmem [shape: f32[256,8], index: 0, kind: input, shape index: {}]
  %s1 = inlined_call_operand.vmem [shape: f32[64,8], index: 1, kind: input, shape index: {}]
  %s2 = inlined_call_operand.vmem [shape: f32[64,1], index: 2, kind: input, shape index: {}]
  %s3 = inlined_call_operand.vmem [shape: f32[64,1], index: 3, kind: input, shape index: {}]
  %s4 = inlined_call_operand.<no memory space> [shape: f32[1,1], index: 4, kind: input, shape index: {}]
  %s5 = inlined_call_operand.hbm [shape: f32[1,1,256], index: 5, kind: output, shape index: {}]
  %s6 = sld [smem:[#allocation0]]
  $region30: #{tpu_custom_call.1} parent=0
    _
  %s8 = ssub.s32 1, %s6
  %s9 = scalar_select 0, %s8, %s6
  %v10 = vstv %s4
  %11 = vst [vmem:[#allocation2] sm:$0x1] %v10
  $region1: #{tpu_custom_call.1} parent=0
    #allocation3 [shape = 'u8[1024]{0}', space=vmem, size = 0x400, scoped, tag = 'output window, operand 0, single buffered']
    #allocation4 [shape = 's32[1]{0}', space=sflag, size = 0x4, scoped, tag = 'scoped memory for tpu_custom_call.1']
    %12 = vsyncpa [#allocation4], 0
    // Predicated region
    $region2: #{tpu_custom_call.1} parent=1 // pred_check
      _
    $region3: #{tpu_custom_call.1} parent=1 // pred_check_branch
      %14 = sbr.rel (0) target = $region5
    $region4: #{tpu_custom_call.1} parent=1 // pred_region
      _
    $region5: #{tpu_custom_call.1} parent=1 // pred_fallthru
      _
    // Predicated region
    $region6: #{tpu_custom_call.1} parent=1 // pred_check
      _
    $region7: #{tpu_custom_call.1} parent=1 // pred_check_branch
      %16 = sbr.rel (0) target = $region9
    $region8: #{tpu_custom_call.1} parent=1 // pred_region
      _
    $region9: #{tpu_custom_call.1} parent=1 // pred_fallthru
      _
    // Predicated region
    $region10: #{tpu_custom_call.1} parent=1 // pred_check
      _
    $region11: #{tpu_custom_call.1} parent=1 // pred_check_branch
      %18 = sbr.rel (0) target = $region13
    $region12: #{tpu_custom_call.1} parent=1 // pred_region
      _
    $region13: #{tpu_custom_call.1} parent=1 // pred_fallthru
      _
    // Predicated region
    $region14: #{tpu_custom_call.1} parent=1 // pred_check
      _
    $region15: #{tpu_custom_call.1} parent=1 // pred_check_branch
      %20 = sbr.rel (0) target = $region17
    $region16: #{tpu_custom_call.1} parent=1 // pred_region
      _
    $region17: #{tpu_custom_call.1} parent=1 // pred_fallthru
      _
    // Predicated region
    $region18: #{tpu_custom_call.1} parent=1 // pred_check
      _
    $region19: #{tpu_custom_call.1} parent=1 // pred_check_branch
      %22 = sbr.rel (0) target = $region21
    $region20: #{tpu_custom_call.1} parent=1 // pred_region
      _
    $region21: #{tpu_custom_call.1} parent=1 // pred_fallthru
      _
    %v23 = vld [vmem:[%s0] sm:$0xff]
    %v24 = vld [vmem:[%s0 + $0x8] sm:$0xff]
    %v25 = vld [vmem:[%s0 + $0x10] sm:$0xff]
    %v26 = vld [vmem:[%s0 + $0x18] sm:$0xff]
    %v27 = vld [vmem:[%s0 + $0x20] sm:$0xff]
    %v28 = vld [vmem:[%s0 + $0x28] sm:$0xff]
    %v29 = vld [vmem:[%s0 + $0x30] sm:$0xff]
    %v30 = vld [vmem:[%s0 + $0x38] sm:$0xff]
    %v31 = vld [vmem:[%s0 + $0x40] sm:$0xff]
    %v32 = vld [vmem:[%s0 + $0x48] sm:$0xff]
    %v33 = vld [vmem:[%s0 + $0x50] sm:$0xff]
    %v34 = vld [vmem:[%s0 + $0x58] sm:$0xff]
    %v35 = vld [vmem:[%s0 + $0x60] sm:$0xff]
    %v36 = vld [vmem:[%s0 + $0x68] sm:$0xff]
    %v37 = vld [vmem:[%s0 + $0x70] sm:$0xff]
    %v38 = vld [vmem:[%s0 + $0x78] sm:$0xff]
    %v39 = vld [vmem:[%s0 + $0x80] sm:$0xff]
    %v40 = vld [vmem:[%s0 + $0x88] sm:$0xff]
    %v41 = vld [vmem:[%s0 + $0x90] sm:$0xff]
    %v42 = vld [vmem:[%s0 + $0x98] sm:$0xff]
    %v43 = vld [vmem:[%s0 + $0xa0] sm:$0xff]
    %v44 = vld [vmem:[%s0 + $0xa8] sm:$0xff]
    %v45 = vld [vmem:[%s0 + $0xb0] sm:$0xff]
    %v46 = vld [vmem:[%s0 + $0xb8] sm:$0xff]
    %v47 = vld [vmem:[%s0 + $0xc0] sm:$0xff]
    %v48 = vld [vmem:[%s0 + $0xc8] sm:$0xff]
    %v49 = vld [vmem:[%s0 + $0xd0] sm:$0xff]
    %v50 = vld [vmem:[%s0 + $0xd8] sm:$0xff]
    %v51 = vld [vmem:[%s0 + $0xe0] sm:$0xff]
    %v52 = vld [vmem:[%s0 + $0xe8] sm:$0xff]
    %v53 = vld [vmem:[%s0 + $0xf0] sm:$0xff]
    %v54 = vld [vmem:[%s0 + $0xf8] sm:$0xff]
    %v55 = vld [vmem:[%s1] sm:$0xff]
    %v56 = vld [vmem:[%s1 + $0x8] sm:$0xff]
    %v57 = vld [vmem:[%s1 + $0x10] sm:$0xff]
    %v58 = vld [vmem:[%s1 + $0x18] sm:$0xff]
    %v59 = vld [vmem:[%s1 + $0x20] sm:$0xff]
    %v60 = vld [vmem:[%s1 + $0x28] sm:$0xff]
    %v61 = vld [vmem:[%s1 + $0x30] sm:$0xff]
    %v62 = vld [vmem:[%s1 + $0x38] sm:$0xff]
    %v63 = vld [vmem:[%s2] sm:$0xff]
    %v64 = vld [vmem:[%s2 + $0x8] sm:$0xff]
    %v65 = vld [vmem:[%s2 + $0x10] sm:$0xff]
    %v66 = vld [vmem:[%s2 + $0x18] sm:$0xff]
    %v67 = vld [vmem:[%s2 + $0x20] sm:$0xff]
    %v68 = vld [vmem:[%s2 + $0x28] sm:$0xff]
    %v69 = vld [vmem:[%s2 + $0x30] sm:$0xff]
    %v70 = vld [vmem:[%s2 + $0x38] sm:$0xff]
    %72 = vset.pattern.permute.xlu0 0
    %73 = vperm.xlu0 %72, %v63
    %v74 = vpop.permute.xlu0 %73
    %77 = vset.pattern.permute.xlu0 0
    %78 = vperm.xlu0 %77, %v64
    %v79 = vpop.permute.xlu0 %78
    %82 = vset.pattern.permute.xlu0 0
    %83 = vperm.xlu0 %82, %v65
    %v84 = vpop.permute.xlu0 %83
    %87 = vset.pattern.permute.xlu0 0
    %88 = vperm.xlu0 %87, %v66
    %v89 = vpop.permute.xlu0 %88
    %92 = vset.pattern.permute.xlu0 0
    %93 = vperm.xlu0 %92, %v67
    %v94 = vpop.permute.xlu0 %93
    %97 = vset.pattern.permute.xlu0 0
    %98 = vperm.xlu0 %97, %v68
    %v99 = vpop.permute.xlu0 %98
    %102 = vset.pattern.permute.xlu0 0
    %103 = vperm.xlu0 %102, %v69
    %v104 = vpop.permute.xlu0 %103
    %107 = vset.pattern.permute.xlu0 0
    %108 = vperm.xlu0 %107, %v70
    %v109 = vpop.permute.xlu0 %108
    %vm111 = vcmask 64512
    %v113 = vsel %vm111, %v55, 0
    %v116 = vsel %vm111, %v56, 0
    %v119 = vsel %vm111, %v57, 0
    %v122 = vsel %vm111, %v58, 0
    %v125 = vsel %vm111, %v59, 0
    %v128 = vsel %vm111, %v60, 0
    %v131 = vsel %vm111, %v61, 0
    %v134 = vsel %vm111, %v62, 0
    %v137 = vsel %vm111, %v23, 0
    %v140 = vsel %vm111, %v24, 0
    %v143 = vsel %vm111, %v25, 0
    %v146 = vsel %vm111, %v26, 0
    %v149 = vsel %vm111, %v27, 0
    %v152 = vsel %vm111, %v28, 0
    %v155 = vsel %vm111, %v29, 0
    %v158 = vsel %vm111, %v30, 0
    %v161 = vsel %vm111, %v31, 0
    %v164 = vsel %vm111, %v32, 0
    %v167 = vsel %vm111, %v33, 0
    %v170 = vsel %vm111, %v34, 0
    %v173 = vsel %vm111, %v35, 0
    %v176 = vsel %vm111, %v36, 0
    %v179 = vsel %vm111, %v37, 0
    %v182 = vsel %vm111, %v38, 0
    %v185 = vsel %vm111, %v39, 0
    %v188 = vsel %vm111, %v40, 0
    %v191 = vsel %vm111, %v41, 0
    %v194 = vsel %vm111, %v42, 0
    %v197 = vsel %vm111, %v43, 0
    %v200 = vsel %vm111, %v44, 0
    %v203 = vsel %vm111, %v45, 0
    %v206 = vsel %vm111, %v46, 0
    %v209 = vsel %vm111, %v47, 0
    %v212 = vsel %vm111, %v48, 0
    %v215 = vsel %vm111, %v49, 0
    %v218 = vsel %vm111, %v50, 0
    %v221 = vsel %vm111, %v51, 0
    %v224 = vsel %vm111, %v52, 0
    %v227 = vsel %vm111, %v53, 0
    %v230 = vsel %vm111, %v54, 0
    %232 = vmatprep.subr.mxu0 0.0
    %233 = vmatpush1.xpose.msra.mxu0 %v182
    %234 = vmatprep.subr.mxu0 0.0
    %235 = vmatpush1.xpose.msra.mxu0 %v179
    %236 = vmatprep.subr.mxu0 0.0
    %237 = vmatpush1.xpose.msra.mxu0 %v176
    %238 = vmatprep.subr.mxu0 0.0
    %239 = vmatpush1.xpose.msra.mxu0 %v173
    %240 = vmatprep.subr.mxu0 0.0
    %241 = vmatpush1.xpose.msra.mxu0 %v170
    %242 = vmatprep.subr.mxu0 0.0
    %243 = vmatpush1.xpose.msra.mxu0 %v167
    %244 = vmatprep.subr.mxu0 0.0
    %245 = vmatpush1.xpose.msra.mxu0 %v164
    %246 = vmatprep.subr.mxu0 0.0
    %247 = vmatpush1.xpose.msra.mxu0 %v161
    %248 = vmatprep.subr.mxu0 0.0
    %249 = vmatpush1.xpose.msra.mxu0 %v158
    %250 = vmatprep.subr.mxu0 0.0
    %251 = vmatpush1.xpose.msra.mxu0 %v155
    %252 = vmatprep.subr.mxu0 0.0
    %253 = vmatpush1.xpose.msra.mxu0 %v152
    %254 = vmatprep.subr.mxu0 0.0
    %255 = vmatpush1.xpose.msra.mxu0 %v149
    %256 = vmatprep.subr.mxu0 0.0
    %257 = vmatpush1.xpose.msra.mxu0 %v146
    %258 = vmatprep.subr.mxu0 0.0
    %259 = vmatpush1.xpose.msra.mxu0 %v143
    %260 = vmatprep.subr.mxu0 0.0
    %261 = vmatpush1.xpose.msra.mxu0 %v140
    %262 = vmatprep.subr.mxu0 0.0
    %263 = vmatpush1.xpose.msra.mxu0 %v137
    %264 = vmatprep.subr.mxu0 0.0
    %265 = vmatpush2.xpose.msra.mxu0 %v230
    %266 = vmatprep.subr.mxu0 0.0
    %267 = vmatpush2.xpose.msra.mxu0 %v227
    %268 = vmatprep.subr.mxu0 0.0
    %269 = vmatpush2.xpose.msra.mxu0 %v224
    %270 = vmatprep.subr.mxu0 0.0
    %271 = vmatpush2.xpose.msra.mxu0 %v221
    %272 = vmatprep.subr.mxu0 0.0
    %273 = vmatpush2.xpose.msra.mxu0 %v218
    %274 = vmatprep.subr.mxu0 0.0
    %275 = vmatpush2.xpose.msra.mxu0 %v215
    %276 = vmatprep.subr.mxu0 0.0
    %277 = vmatpush2.xpose.msra.mxu0 %v212
    %278 = vmatprep.subr.mxu0 0.0
    %279 = vmatpush2.xpose.msra.mxu0 %v209
    %280 = vmatprep.subr.mxu0 0.0
    %281 = vmatpush2.xpose.msra.mxu0 %v206
    %282 = vmatprep.subr.mxu0 0.0
    %283 = vmatpush2.xpose.msra.mxu0 %v203
    %284 = vmatprep.subr.mxu0 0.0
    %285 = vmatpush2.xpose.msra.mxu0 %v200
    %286 = vmatprep.subr.mxu0 0.0
    %287 = vmatpush2.xpose.msra.mxu0 %v197
    %288 = vmatprep.subr.mxu0 0.0
    %289 = vmatpush2.xpose.msra.mxu0 %v194
    %290 = vmatprep.subr.mxu0 0.0
    %291 = vmatpush2.xpose.msra.mxu0 %v191
    %292 = vmatprep.subr.mxu0 0.0
    %293 = vmatpush2.xpose.msra.mxu0 %v188
    %294 = vmatprep.subr.mxu0 0.0
    %295 = vmatpush2.xpose.msra.mxu0 %v185
    %296 = vmatprep.mubr.f32.mxu0 0.0
    %297 = vmatmul.mubr.f32.gmra.mxu0 %v113
    %v298 = vpop.f32.mrf.mxu0
    %v299 = vadd.f32 %v74, %v298
    %v300 = vpop.f32.mrf.mxu0
    %v301 = vadd.f32 %v74, %v300
    %302 = vmatprep.mubr.f32.mxu0 0.0
    %303 = vmatmul.mubr.f32.gmra.mxu0 %v116
    %v304 = vpop.f32.mrf.mxu0
    %v305 = vadd.f32 %v79, %v304
    %v306 = vpop.f32.mrf.mxu0
    %v307 = vadd.f32 %v79, %v306
    %308 = vmatprep.mubr.f32.mxu0 0.0
    %309 = vmatmul.mubr.f32.gmra.mxu0 %v119
    %v310 = vpop.f32.mrf.mxu0
    %v311 = vadd.f32 %v84, %v310
    %v312 = vpop.f32.mrf.mxu0
    %v313 = vadd.f32 %v84, %v312
    %314 = vmatprep.mubr.f32.mxu0 0.0
    %315 = vmatmul.mubr.f32.gmra.mxu0 %v122
    %v316 = vpop.f32.mrf.mxu0
    %v317 = vadd.f32 %v89, %v316
    %v318 = vpop.f32.mrf.mxu0
    %v319 = vadd.f32 %v89, %v318
    %320 = vmatprep.mubr.f32.mxu0 0.0
    %321 = vmatmul.mubr.f32.gmra.mxu0 %v125
    %v322 = vpop.f32.mrf.mxu0
    %v323 = vadd.f32 %v94, %v322
    %v324 = vpop.f32.mrf.mxu0
    %v325 = vadd.f32 %v94, %v324
    %326 = vmatprep.mubr.f32.mxu0 0.0
    %327 = vmatmul.mubr.f32.gmra.mxu0 %v128
    %v328 = vpop.f32.mrf.mxu0
    %v329 = vadd.f32 %v99, %v328
    %v330 = vpop.f32.mrf.mxu0
    %v331 = vadd.f32 %v99, %v330
    %332 = vmatprep.mubr.f32.mxu0 0.0
    %333 = vmatmul.mubr.f32.gmra.mxu0 %v131
    %v334 = vpop.f32.mrf.mxu0
    %v335 = vadd.f32 %v104, %v334
    %v336 = vpop.f32.mrf.mxu0
    %v337 = vadd.f32 %v104, %v336
    %338 = vmatprep.mubr.f32.mxu0 0.0
    %339 = vmatmul.mubr.f32.gmra.mxu0 %v134
    %v340 = vpop.f32.mrf.mxu0
    %v341 = vadd.f32 %v109, %v340
    %v342 = vpop.f32.mrf.mxu0
    %v343 = vadd.f32 %v109, %v342
    %344 = vdwg.mxu0
    %v345 = vmax.f32 %v299, 0.0
    %v346 = vmax.f32 %v301, 0.0
    %v347 = vmax.f32 %v305, 0.0
    %v348 = vmax.f32 %v307, 0.0
    %v349 = vmax.f32 %v311, 0.0
    %v350 = vmax.f32 %v313, 0.0
    %v351 = vmax.f32 %v317, 0.0
    %v352 = vmax.f32 %v319, 0.0
    %v353 = vmax.f32 %v323, 0.0
    %v354 = vmax.f32 %v325, 0.0
    %v355 = vmax.f32 %v329, 0.0
    %v356 = vmax.f32 %v331, 0.0
    %v357 = vmax.f32 %v335, 0.0
    %v358 = vmax.f32 %v337, 0.0
    %v359 = vmax.f32 %v341, 0.0
    %v360 = vmax.f32 %v343, 0.0
    %v361 = vld [vmem:[%s3] sm:$0xff]
    %v362 = vld [vmem:[%s3 + $0x8] sm:$0xff]
    %v363 = vld [vmem:[%s3 + $0x10] sm:$0xff]
    %v364 = vld [vmem:[%s3 + $0x18] sm:$0xff]
    %v365 = vld [vmem:[%s3 + $0x20] sm:$0xff]
    %v366 = vld [vmem:[%s3 + $0x28] sm:$0xff]
    %v367 = vld [vmem:[%s3 + $0x30] sm:$0xff]
    %v368 = vld [vmem:[%s3 + $0x38] sm:$0xff]
    %370 = vset.pattern.permute.xlu0 0
    %371 = vperm.xlu0 %370, %v361
    %v372 = vpop.permute.xlu0 %371
    %375 = vset.pattern.permute.xlu0 0
    %376 = vperm.xlu0 %375, %v362
    %v377 = vpop.permute.xlu0 %376
    %380 = vset.pattern.permute.xlu0 0
    %381 = vperm.xlu0 %380, %v363
    %v382 = vpop.permute.xlu0 %381
    %385 = vset.pattern.permute.xlu0 0
    %386 = vperm.xlu0 %385, %v364
    %v387 = vpop.permute.xlu0 %386
    %390 = vset.pattern.permute.xlu0 0
    %391 = vperm.xlu0 %390, %v365
    %v392 = vpop.permute.xlu0 %391
    %395 = vset.pattern.permute.xlu0 0
    %396 = vperm.xlu0 %395, %v366
    %v397 = vpop.permute.xlu0 %396
    %400 = vset.pattern.permute.xlu0 0
    %401 = vperm.xlu0 %400, %v367
    %v402 = vpop.permute.xlu0 %401
    %405 = vset.pattern.permute.xlu0 0
    %406 = vperm.xlu0 %405, %v368
    %v407 = vpop.permute.xlu0 %406
    %v409 = vmul.f32 %v345, %v372
    %v410 = vmul.f32 %v346, %v372
    %v411 = vmul.f32 %v347, %v377
    %v412 = vmul.f32 %v348, %v377
    %v413 = vmul.f32 %v349, %v382
    %v414 = vmul.f32 %v350, %v382
    %v415 = vmul.f32 %v351, %v387
    %v416 = vmul.f32 %v352, %v387
    %v417 = vmul.f32 %v353, %v392
    %v418 = vmul.f32 %v354, %v392
    %v419 = vmul.f32 %v355, %v397
    %v420 = vmul.f32 %v356, %v397
    %v421 = vmul.f32 %v357, %v402
    %v422 = vmul.f32 %v358, %v402
    %v423 = vmul.f32 %v359, %v407
    %v424 = vmul.f32 %v360, %v407
    %v425 = vadd.f32 %v409, %v411
    %v426 = vadd.f32 %v425, %v413
    %v427 = vadd.f32 %v426, %v415
    %v428 = vadd.f32 %v427, %v417
    %v429 = vadd.f32 %v428, %v419
    %v430 = vadd.f32 %v429, %v421
    %v431 = vadd.f32 %v430, %v423
    %v432 = vrot.slane %v431, 4
    %v433 = vadd.f32 %v431, %v432
    %v434 = vrot.slane %v433, 2
    %v435 = vadd.f32 %v433, %v434
    %v436 = vrot.slane %v435, 1
    %v437 = vadd.f32 %v435, %v436
    %v438 = vadd.f32 %v410, %v412
    %v439 = vadd.f32 %v438, %v414
    %v440 = vadd.f32 %v439, %v416
    %v441 = vadd.f32 %v440, %v418
    %v442 = vadd.f32 %v441, %v420
    %v443 = vadd.f32 %v442, %v422
    %v444 = vadd.f32 %v443, %v424
    %v445 = vrot.slane %v444, 4
    %v446 = vadd.f32 %v444, %v445
    %v447 = vrot.slane %v446, 2
    %v448 = vadd.f32 %v446, %v447
    %v449 = vrot.slane %v448, 1
    %v450 = vadd.f32 %v448, %v449
    %v451 = vld [vmem:[#allocation2] sm:$0x1]
    %453 = vset.pattern.permute.xlu0 0
    %454 = vperm.xlu0 %453, %v451
    %v455 = vpop.permute.xlu0 %454
    %v457 = vlaneseq
    %v458 = vshrl.u32 %v457, 7
    %v459 = vsub.s32 0, %v458
    %v460 = vrot.slane %v455, %v459
    %v461 = vadd.f32 %v437, %v460
    %v462 = vadd.f32 %v450, %v460
    %v465 = vcombine.low %v461, %v462
    %v467 = vunpack.c.l.s4 1966171168
    %v468 = vunpack.c.0.s8 %v467
    %v469 = vlaneseq
    %v470 = vshrl.u32 %v469, 7
    %v471 = vsub.s32 %v468, %v470
    %v472 = vrot.slane %v465, %v471
    %v474 = vunpack.c.l.s4 1966171168
    %v475 = vunpack.c.0.s8 %v474
    %v476 = vlaneseq
    %v477 = vshrl.u32 %v476, 7
    %v478 = vsub.s32 %v475, %v477
    %v479 = vrot.slane %v472, %v478
    %v481 = vlaneseq
    %vm482 = vcmp.ge.s32.totalorder %v481, 0
    %vm483 = vcmp.lt.s32.totalorder %v481, 256
    %vm484 = vmand %vm482, %vm483
    %485 = vst.msk [vmem:[#allocation3] sm:$0x3] %vm484, %v479
    // Predicated region
    $region22: #{tpu_custom_call.1} parent=1 // pred_check
      _
    $region23: #{tpu_custom_call.1} parent=1 // pred_check_branch
      %487 = sbr.rel (0) target = $region25
    $region24: #{tpu_custom_call.1} parent=1 // pred_region
      %s489 = ssub.s32 32, 32
      %490 = vsyncadd [#allocation4], %s489
      %s492 = sshll.u32 [#allocation3], 4
      %s493 = int_to_ptr.vmem [resolvable:$true] %s492
      %495 = dma.vmem_to_hbm [thread:$0]  %s493, 32, %s5, [#allocation4]
    $region25: #{tpu_custom_call.1} parent=1 // pred_fallthru
      _
    // Predicated region
    $region26: #{tpu_custom_call.1} parent=1 // pred_check
      _
    $region27: #{tpu_custom_call.1} parent=1 // pred_check_branch
      %497 = sbr.rel (0) target = $region29
    $region28: #{tpu_custom_call.1} parent=1 // pred_region
      %498 = dma.done [#allocation4], 32
    $region29: #{tpu_custom_call.1} parent=1 // pred_fallthru
      _
    %499 = vsyncpa [#allocation4], 1

</llo_original>
